<compile_context>
chip_gen: v5e
topology: v5e:2x2
jax: 0.10.0
libtpu: 0.0.40
codegen_flags: <defaults>
</compile_context>

<pallas_src>
import math
from functools import partial

import jax
import jax.numpy as jnp
from jax import lax
from jax.experimental import pallas as pl
from jax.experimental.pallas import tpu as pltpu


_LANES = 128            # batch elements per dense row (lane axis)
_ROW_PAD = 8 * _LANES   # pad batch only to one (8, 128) sublane tile


def _loan_kernel(x_ref, w_ref, b_ref, o_ref):
    """x_ref: (2, TS, 128) f32 VMEM -- feature-major, batch dense on (sublane, lane).
    w_ref: (2,) f32 SMEM, b_ref: (1,) f32 SMEM -- scalar parameters.
    o_ref: (TS, 128) f32 VMEM -- lane/sublane-dense probabilities."""
    x0 = x_ref[0]                                    # (TS, 128)
    x1 = x_ref[1]                                    # (TS, 128)
    z = x0 * w_ref[0] + x1 * w_ref[1] + b_ref[0]     # 2 VPU FMAs
    # Clamp so exp(-z) stays finite (sigmoid(-60) ~ 9e-27, far below f32 atol);
    # also avoids inf -> NaN in the Newton step on garbage lanes of a partial
    # (masked) last block.
    z = jnp.maximum(z, -60.0)
    d = 1.0 + jnp.exp(-z)                            # exp on the EUP
    r = pl.reciprocal(d, approx=True)                # EUP seed (otherwise-idle slot)
    o_ref[...] = r * (2.0 - d * r)                   # 1 Newton step -> f32-accurate


def _choose_tile_rows(num_rows: int, tile_rows_max: int) -> int:
    """Rows (of 128 batch elems) per grid step: multiple of 8, <= num_rows."""
    ts = min(tile_rows_max, num_rows)
    # v7x has 2 TensorCores: give the "parallel" batch axis >= 4 steps once the
    # batch is big enough that per-step tiles stay >= 1024 rows (128K elems).
    if num_rows >= 4 * 1024:
        ts = min(ts, max(1024, pl.cdiv(num_rows, 4)))
    return max(8, (ts // 8) * 8)


def loan_approval_forward_feature_major(x_fm, w_flat, b_flat, *, tile_rows_max=4096):
    """sigmoid(w0 * x0 + w1 * x1 + b) on a feature-major, dense batch slab.

    x_fm:   (2, R, 128) f32 -- x_fm[f, r, l] = feature f of batch element r*128+l
    w_flat: (2,) f32
    b_flat: (1,) f32
    returns (R, 128) f32
    """
    _, num_rows, lanes = x_fm.shape
    assert lanes == _LANES and num_rows % 8 == 0
    ts = _choose_tile_rows(num_rows, tile_rows_max)
    # Last block may be partial: padded reads are garbage (harmless, per-element
    # math only) and out-of-bounds writes are masked by the pipeline.
    grid = (pl.cdiv(num_rows, ts),)

    return pl.pallas_call(
        _loan_kernel,
        out_shape=jax.ShapeDtypeStruct((num_rows, _LANES), jnp.float32),
        grid_spec=pltpu.PrefetchScalarGridSpec(
            num_scalar_prefetch=0,
            grid=grid,
            in_specs=[
                # x: dense (2, TS, 128) slabs tiled along the batch-row axis.
                pl.BlockSpec((2, ts, _LANES), lambda i: (0, i, 0)),
                # weights / bias: whole arrays in SMEM, read as scalars.
                pl.BlockSpec(memory_space=pltpu.MemorySpace.SMEM),
                pl.BlockSpec(memory_space=pltpu.MemorySpace.SMEM),
            ],
            out_specs=pl.BlockSpec((ts, _LANES), lambda i: (i, 0)),
        ),
        compiler_params=pltpu.CompilerParams(
            dimension_semantics=("parallel",),
            # in (4 MiB) + out (2 MiB), double-buffered ~= 12 MiB at ts=4096;
            # explicit cap with headroom, well under v7x's 64 MiB physical VMEM.
            vmem_limit_bytes=40 * 1024 * 1024,
        ),
    )(x_fm, w_flat, b_flat)


@partial(jax.jit, static_argnames=("tile_rows_max",))
def loan_approval_forward(x, w_t, b, *, tile_rows_max=4096):
    """PyTorch-layout forward: sigmoid(x @ w_t + b).

    x:   (B, 2) f32 (same layout as the nn.Linear input)
    w_t: (2, 1) f32 (transposed nn.Linear weight)
    b:   (1, 1) f32
    returns (B, 1) f32
    """
    B = x.shape[0]
    x = x.astype(jnp.float32)

    # Pad only to one (8, 128) tile -- never to a multiple of the grid tile.
    b_pad = pl.cdiv(B, _ROW_PAD) * _ROW_PAD
    num_rows = b_pad // _LANES
    xp = jnp.pad(x, ((0, b_pad - B), (0, 0))) if b_pad != B else x

    # Feature-major dense slab. This transpose is the one remaining extra HBM
    # read+write of x for (B, 2)-layout callers.
    # TODO(synk): producers that can emit feature-major activations should call
    # loan_approval_forward_feature_major directly and skip this pass; an
    # in-kernel deinterleave of the natural interleaved layout (roll/mask or a
    # structured-weight MXU matmul) could remove it here too. bf16 I/O would
    # further halve HBM bytes, numerics permitting.
    x_fm = xp.T.reshape(2, num_rows, _LANES)

    w_flat = w_t.reshape(-1).astype(jnp.float32)   # [w0, w1]
    b_flat = b.reshape(-1).astype(jnp.float32)     # [bias]

    out_fm = loan_approval_forward_feature_major(
        x_fm, w_flat, b_flat, tile_rows_max=tile_rows_max)

    # Back to the PyTorch-facing (B, 1) layout (free reshape + slice).
    return out_fm.reshape(b_pad, 1)[:B]


def init_params(key):
    """Matches the PyTorch init: xavier_uniform_ on a (1, 2) weight, zero bias."""
    in_features, out_features = 2, 1
    bound = math.sqrt(6.0 / (in_features + out_features))
    w = jax.random.uniform(
        key, (out_features, in_features), jnp.float32, minval=-bound, maxval=bound
    )
    return w.T, jnp.zeros((1, out_features), jnp.float32)   # (2, 1), (1, 1)


def reference_forward(x, w_t, b):
    z = jnp.dot(x, w_t, precision=lax.Precision.HIGHEST) + b
    return jax.nn.sigmoid(z)


if __name__ == "__main__":
    key = jax.random.PRNGKey(0)
    k_w, k_x = jax.random.split(key)
    w_t, b = init_params(k_w)

    # Small batches consistent with the (B, 2) module input. The extra cases
    # exercise a multi-step "parallel" grid and a partial last block.
    cases = [
        dict(batch=8, tile_rows_max=4096),    # single block
        dict(batch=2500, tile_rows_max=8),    # 3 full grid steps
        dict(batch=2500, tile_rows_max=16),   # 2 steps, partial last block
    ]
    for i, case in enumerate(cases):
        kx = jax.random.fold_in(k_x, i)
        x = jax.random.normal(kx, (case["batch"], 2), jnp.float32)
        out = loan_approval_forward(x, w_t, b, tile_rows_max=case["tile_rows_max"])
        out = jax.block_until_ready(out)
        ref = reference_forward(x, w_t, b)
        assert out.shape == (case["batch"], 1)
        assert jnp.allclose(out, ref, atol=2e-5, rtol=0.0), (
            f"kernel/reference mismatch for case {case}"
        )

    print("KERNEL_OK")
</pallas_src>

<mosaic_0001>
module attributes {stable_mosaic.version = 11 : i64} {
  func.func @_loan_kernel(%arg0: i32, %arg1: memref<2x8x128xf32, #tpu.memory_space<vmem>>, %arg2: memref<2xf32, #tpu.memory_space<smem>>, %arg3: memref<1xf32, #tpu.memory_space<smem>>, %arg4: memref<8x128xf32, #tpu.memory_space<vmem>>) attributes {dimension_semantics = [#tpu.dimension_semantics<parallel>], iteration_bounds = array<i64: 1>, scalar_prefetch = 0 : i64, scratch_operands = 0 : i64, tpu.core_type = #tpu.core_type<tc>, window_params = [{transform_indices = @transform_0, window_bounds = array<i64: 2, 8, 128>}, {transform_indices = @transform_1, window_bounds = array<i64: 2>}, {transform_indices = @transform_2, window_bounds = array<i64: 1>}, {transform_indices = @transform_3, window_bounds = array<i64: 8, 128>}]} {
    %c0 = arith.constant 0 : index
    %c0_0 = arith.constant 0 : index
    %c0_1 = arith.constant 0 : index
    %0 = vector.load %arg1[%c0, %c0_0, %c0_1] : memref<2x8x128xf32, #tpu.memory_space<vmem>>, vector<1x8x128xf32>
    %1 = vector.shape_cast %0 : vector<1x8x128xf32> to vector<8x128xf32>
    %c1 = arith.constant 1 : index
    %c0_2 = arith.constant 0 : index
    %c0_3 = arith.constant 0 : index
    %2 = vector.load %arg1[%c1, %c0_2, %c0_3] : memref<2x8x128xf32, #tpu.memory_space<vmem>>, vector<1x8x128xf32>
    %3 = vector.shape_cast %2 : vector<1x8x128xf32> to vector<8x128xf32>
    %c0_4 = arith.constant 0 : index
    %4 = memref.load %arg2[%c0_4] : memref<2xf32, #tpu.memory_space<smem>>
    %5 = vector.broadcast %4 : f32 to vector<8x128xf32>
    %6 = arith.mulf %1, %5 : vector<8x128xf32>
    %c1_5 = arith.constant 1 : index
    %7 = memref.load %arg2[%c1_5] : memref<2xf32, #tpu.memory_space<smem>>
    %8 = vector.broadcast %7 : f32 to vector<8x128xf32>
    %9 = arith.mulf %3, %8 : vector<8x128xf32>
    %10 = arith.addf %6, %9 : vector<8x128xf32>
    %c0_6 = arith.constant 0 : index
    %11 = memref.load %arg3[%c0_6] : memref<1xf32, #tpu.memory_space<smem>>
    %12 = vector.broadcast %11 : f32 to vector<8x128xf32>
    %13 = arith.addf %10, %12 : vector<8x128xf32>
    %cst = arith.constant -6.000000e+01 : f32
    %14 = vector.broadcast %cst : f32 to vector<8x128xf32>
    %15 = arith.maximumf %13, %14 : vector<8x128xf32>
    %cst_7 = arith.constant 0.000000e+00 : f32
    %16 = vector.broadcast %cst_7 : f32 to vector<8x128xf32>
    %17 = arith.subf %16, %15 : vector<8x128xf32>
    %18 = math.exp %17 : vector<8x128xf32>
    %cst_8 = arith.constant 1.000000e+00 : f32
    %19 = vector.broadcast %cst_8 : f32 to vector<8x128xf32>
    %20 = arith.addf %19, %18 : vector<8x128xf32>
    %21 = tpu.reciprocal %20 {approx = true} : vector<8x128xf32> -> vector<8x128xf32>
    %22 = arith.mulf %20, %21 : vector<8x128xf32>
    %cst_9 = arith.constant 2.000000e+00 : f32
    %23 = vector.broadcast %cst_9 : f32 to vector<8x128xf32>
    %24 = arith.subf %23, %22 : vector<8x128xf32>
    %25 = arith.mulf %21, %24 : vector<8x128xf32>
    %c0_10 = arith.constant 0 : index
    %c0_11 = arith.constant 0 : index
    %26 = vector.load %arg4[%c0_10, %c0_11] : memref<8x128xf32, #tpu.memory_space<vmem>>, vector<8x128xf32>
    tpu.vector_store %arg4[%c0_10, %c0_11], %25 {strides = array<i32>} : memref<8x128xf32, #tpu.memory_space<vmem>>, vector<8x128xf32>,
    return
  }
  func.func @transform_0(%arg0: i32) -> (i32, i32, i32) {
    %c0_i32 = arith.constant 0 : i32
    %c0_i32_0 = arith.constant 0 : i32
    %c0_i32_1 = arith.constant 0 : i32
    return %c0_i32, %arg0, %c0_i32_0 : i32, i32, i32
  }
  func.func @transform_1(%arg0: i32) -> i32 {
    %c0_i32 = arith.constant 0 : i32
    %c0_i32_0 = arith.constant 0 : i32
    return %c0_i32 : i32
  }
  func.func @transform_2(%arg0: i32) -> i32 {
    %c0_i32 = arith.constant 0 : i32
    %c0_i32_0 = arith.constant 0 : i32
    return %c0_i32 : i32
  }
  func.func @transform_3(%arg0: i32) -> (i32, i32) {
    %c0_i32 = arith.constant 0 : i32
    %c0_i32_0 = arith.constant 0 : i32
    return %arg0, %c0_i32 : i32, i32
  }
}

</mosaic_0001>

<llo_original>
// kernel: loan_approval_forward.1
$region0: #{loan_approval_forward.1}
  #allocation0 [shape = 'u32[]', space=smem, size = 0x4, offset = 0x4, fixed_abs, tag = 'smem constant byte address 0x4 - core index']
  #allocation1 [shape = 'u32[72,128]{1,0:T(1,128)}', space=vmem, size = 0x9000, scoped, tag = 'internal scratch']
  #allocation2 [shape = 'f32[1]{0:T(128)S(6)}', space=smem, size = 0x200, scoped, tag = 'scoped memory for loan_approval_forward.1']
  %s0 = inlined_call_operand.vmem [shape: f32[2,8,128], index: 0, kind: input, shape index: {}]
  %s1 = inlined_call_operand.vmem [shape: f32[2], index: 1, kind: input, shape index: {}]
  %s2 = inlined_call_operand.<no memory space> [shape: f32[1], index: 2, kind: input, shape index: {}]
  %s3 = inlined_call_operand.vmem [shape: f32[8,128], index: 3, kind: output, shape index: {}]
  %s4 = sld [smem:[#allocation0]]
  $region26: #{loan_approval_forward.1} parent=0
    _
  %s6 = ssub.s32 1, %s4
  %s7 = scalar_select 0, %s6, %s4
  %8 = sst [smem:[#allocation2]] %s2
  $region1: #{loan_approval_forward.1} parent=0
    #allocation3 [shape = 'u8[512]{0}', space=smem, size = 0x200, scoped, tag = 'input window, operand 1, single buffered']
    #allocation4 [shape = 's32[1]{0}', space=sflag, size = 0x4, scoped, tag = 'scoped memory for loan_approval_forward.1']
    %9 = vsyncpa [#allocation4], 0
    // Predicated region
    $region2: #{loan_approval_forward.1} parent=1 // pred_check
      _
    $region3: #{loan_approval_forward.1} parent=1 // pred_check_branch
      %11 = sbr.rel (0) target = $region5
    $region4: #{loan_approval_forward.1} parent=1 // pred_region
      _
    $region5: #{loan_approval_forward.1} parent=1 // pred_fallthru
      _
    // Predicated region
    $region6: #{loan_approval_forward.1} parent=1 // pred_check
      _
    $region7: #{loan_approval_forward.1} parent=1 // pred_check_branch
      %13 = sbr.rel (0) target = $region9
    $region8: #{loan_approval_forward.1} parent=1 // pred_region
      %15 = vsyncadd [#allocation4], 0
      %s17 = sshll.u32 %s1, 4
      %s18 = int_to_ptr.vmem [resolvable:$true] %s17
      %20 = dma.vmem_to_smem %s18, 16, [#allocation3], [#allocation4]
    $region9: #{loan_approval_forward.1} parent=1 // pred_fallthru
      _
    // Predicated region
    $region10: #{loan_approval_forward.1} parent=1 // pred_check
      _
    $region11: #{loan_approval_forward.1} parent=1 // pred_check_branch
      %22 = sbr.rel (0) target = $region13
    $region12: #{loan_approval_forward.1} parent=1 // pred_region
      _
    $region13: #{loan_approval_forward.1} parent=1 // pred_fallthru
      _
    // Predicated region
    $region14: #{loan_approval_forward.1} parent=1 // pred_check
      _
    $region15: #{loan_approval_forward.1} parent=1 // pred_check_branch
      %24 = sbr.rel (0) target = $region17
    $region16: #{loan_approval_forward.1} parent=1 // pred_region
      %26 = dma.done [#allocation4], 16
    $region17: #{loan_approval_forward.1} parent=1 // pred_fallthru
      _
    %27 = sfence
    %v28 = vld [vmem:[%s0] sm:$0xff]
    %s29 = scalar_lea.vmem %s0, 8
    %v30 = vld [vmem:[%s29] sm:$0xff]
    %s31 = sld [smem:[#allocation3]]
    %v32 = vstv %s31
    %v33 = vmul.f32 %v28, %v32
    %s34 = sld [smem:[#allocation3 + $0x1]]
    %v35 = vstv %s34
    %v36 = vmul.f32 %v30, %v35
    %v37 = vadd.f32 %v33, %v36
    %s38 = sld [smem:[#allocation2]]
    %v39 = vstv %s38
    %v40 = vadd.f32 %v37, %v39
    %v41 = vmax.f32 %v40, -60.0
    %v42 = vsub.f32 0.0, %v41
    %v43 = vmul.f32 %v42, 1.442695
    %v44 = vpow.pop %v43
    %v45 = vadd.f32 %v44, 1.0
    %v46 = vrcp.pop %v45
    %v47 = vmul.f32 %v45, %v46
    %v48 = vsub.f32 2.0, %v47
    %v49 = vmul.f32 %v46, %v48
    %50 = vst [vmem:[%s3] sm:$0xff] %v49
    // Predicated region
    $region18: #{loan_approval_forward.1} parent=1 // pred_check
      _
    $region19: #{loan_approval_forward.1} parent=1 // pred_check_branch
      %52 = sbr.rel (0) target = $region21
    $region20: #{loan_approval_forward.1} parent=1 // pred_region
      _
    $region21: #{loan_approval_forward.1} parent=1 // pred_fallthru
      _
    // Predicated region
    $region22: #{loan_approval_forward.1} parent=1 // pred_check
      _
    $region23: #{loan_approval_forward.1} parent=1 // pred_check_branch
      %54 = sbr.rel (0) target = $region25
    $region24: #{loan_approval_forward.1} parent=1 // pred_region
      _
    $region25: #{loan_approval_forward.1} parent=1 // pred_fallthru
      _
    %55 = vsyncpa [#allocation4], 1

</llo_original>
